<compile_context>
chip_gen: v7x
topology: tpu7x:2x2x1
jax: 0.10.0
libtpu: 0.0.40
codegen_flags: <defaults>
</compile_context>

<pallas_src>
import functools

import jax
import jax.numpy as jnp
from jax.experimental import pallas as pl
from jax.experimental.pallas import tpu as pltpu


def _cdiv(a, b):
    return (a + b - 1) // b


def _round_up(v, m):
    return _cdiv(v, m) * m


def _resblock_kernel(x_ref, w1_ref, b1_ref, w2_ref, b2_ref, o_ref, *, channels, pack):
    """One (batch, L-tile) step of: out = x + (W2 @ relu(W1 @ x + b1) + b2).

    x_ref/o_ref: (C, Lt).  w1_ref: (P*H, P*C) bf16 block-diag.  b1_ref: (P*H, 1) f32.
    w2_ref: (P*C, P*H) bf16 block-diag.  b2_ref: (P*C, 1) f32.
    """
    C = channels
    P = pack
    x = x_ref[...]                                   # (C, Lt), input dtype
    Lt = x.shape[-1]
    Ls = Lt // P                                     # lane sub-tile width (multiple of 128)

    # Pack P lane-aligned position sub-tiles along the sublane axis -> (P*C, Ls).
    # 128-aligned lane slices are whole vregs, so this is relabeling, not XLU work.
    x_pk = jnp.concatenate([x[:, p * Ls:(p + 1) * Ls] for p in range(P)], axis=0)

    # MXU matmuls with explicit bf16 operands + f32 accumulation.
    h = jnp.dot(w1_ref[...], x_pk.astype(jnp.bfloat16),
                preferred_element_type=jnp.float32)                    # (P*H, Ls) f32
    h = jnp.maximum(h + b1_ref[...], 0.0)                              # bias + ReLU, f32 VPU
    y_pk = jnp.dot(w2_ref[...], h.astype(jnp.bfloat16),
                   preferred_element_type=jnp.float32) + b2_ref[...]   # (P*C, Ls) f32

    # Unpack sub-tiles back to (C, Lt) and add the residual in f32.
    y = jnp.concatenate([y_pk[p * C:(p + 1) * C, :] for p in range(P)], axis=1)
    o_ref[...] = (x.astype(jnp.float32) + y).astype(o_ref.dtype)


def _default_pack():
    # Block-diagonal packing factor to fill the MXU stationary tile:
    # 256x256 MXU (v6e/v7x) -> 4, 128x128 MXU (v5e and older) -> 2.
    try:
        kind = jax.devices()[0].device_kind.lower()
    except Exception:
        return 4
    for tag in ("v2", "v3", "v4", "v5 lite", "v5e"):
        if tag in kind:
            return 2
    return 4


def residual_block(x_ncl, w1, b1, w2, b2, *, l_tile=None, pack=None):
    """ResidualBlock forward: x + conv2(relu(conv1(x))), 1x1 convs.

    x_ncl: (N, C, L).  w1: (H, C) or (H, C, 1).  b1: (H,).
    w2: (C, H) or (C, H, 1).  b2: (C,).  (PyTorch Conv1d layouts, kernel dim squeezed.)
    """
    N, C, L = x_ncl.shape
    w1 = jnp.asarray(w1).reshape(jnp.asarray(w1).shape[0], C)
    H = w1.shape[0]
    w2 = jnp.asarray(w2).reshape(C, H)
    itemsize = jnp.dtype(x_ncl.dtype).itemsize

    P = int(pack) if pack is not None else _default_pack()
    lane_q = P * 128                                  # l_tile quantum (lane-dense sub-tiles)

    if l_tile is None:
        # ~20 MiB tile budget keeps us under a 32 MiB scoped VMEM limit on every
        # generation (v5e/v6e: 128 MiB physical, v7x: 64 MiB physical), counting
        # double-buffered in/out tiles plus the bf16/f32 intermediates.
        tile_budget = 20 << 20
        per_pos = (4 * C * itemsize        # double-buffered x and out tiles
                   + 2 * C + 2 * H         # bf16 packed x / h staging copies
                   + 4 * H + 4 * C)        # f32 h and y intermediates
        cap = max(lane_q, (tile_budget // per_pos) // lane_q * lane_q)
        # Minimal-padding tiling: fewest tiles that fit the budget.
        n_tiles = max(1, _cdiv(L, cap))
        l_tile = min(_round_up(_cdiv(L, n_tiles), lane_q), _round_up(L, lane_q))
        # v7x megacore balance: prefer an even total grid-step count.
        steps = N * _cdiv(L, l_tile)
        tries = 0
        while steps % 2 == 1 and l_tile > lane_q and tries < 4:
            l_tile = max(lane_q, _round_up(_cdiv(l_tile, 2), lane_q))
            steps = N * _cdiv(L, l_tile)
            tries += 1
    else:
        l_tile = int(l_tile)
        if l_tile % lane_q != 0:
            raise ValueError(f"l_tile={l_tile} must be a multiple of pack*128={lane_q}")

    num_l = _cdiv(L, l_tile)   # ragged tail handled by Pallas masked edge blocks

    # Block-diagonal bf16 weights (single MXU pass, ~P^2 x better stationary-tile fill).
    w1_bd = jax.scipy.linalg.block_diag(*([w1] * P)).astype(jnp.bfloat16)   # (P*H, P*C)
    w2_bd = jax.scipy.linalg.block_diag(*([w2] * P)).astype(jnp.bfloat16)   # (P*C, P*H)
    b1_t = jnp.tile(jnp.asarray(b1).reshape(H, 1).astype(jnp.float32), (P, 1))
    b2_t = jnp.tile(jnp.asarray(b2).reshape(C, 1).astype(jnp.float32), (P, 1))

    kernel = functools.partial(_resblock_kernel, channels=C, pack=P)

    return pl.pallas_call(
        kernel,
        out_shape=jax.ShapeDtypeStruct((N, C, L), x_ncl.dtype),
        grid=(N, num_l),
        in_specs=[
            pl.BlockSpec((None, C, l_tile), lambda n, l: (n, 0, l)),   # x tile (batch squeezed)
            pl.BlockSpec((P * H, P * C), lambda n, l: (0, 0)),         # W1 block-diag (resident)
            pl.BlockSpec((P * H, 1), lambda n, l: (0, 0)),             # b1
            pl.BlockSpec((P * C, P * H), lambda n, l: (0, 0)),         # W2 block-diag (resident)
            pl.BlockSpec((P * C, 1), lambda n, l: (0, 0)),             # b2
        ],
        out_specs=pl.BlockSpec((None, C, l_tile), lambda n, l: (n, 0, l)),
        compiler_params=pltpu.CompilerParams(
            dimension_semantics=("parallel", "parallel"),
            vmem_limit_bytes=32 << 20),
    )(x_ncl, w1_bd, b1_t, w2_bd, b2_t)


def _reference(x_ncl, w1, b1, w2, b2):
    # Pure-JAX f32 reference of the PyTorch forward (1x1 conv == channel matmul).
    h = jnp.einsum("ncl,hc->nhl", x_ncl, w1) + b1[None, :, None]
    h = jnp.maximum(h, 0.0)
    y = jnp.einsum("nhl,ch->ncl", h, w2) + b2[None, :, None]
    return x_ncl + y


if __name__ == "__main__":
    key = jax.random.PRNGKey(0)
    N, C, L, H = 2, 32, 512, 64   # channels=32 (module default); hidden=64 fixed by module

    k1, k2, k3, k4, k5 = jax.random.split(key, 5)
    x = jax.random.normal(k1, (N, C, L), dtype=jnp.float32)
    # Deterministic synthetic parameters (PyTorch Conv1d shapes with k=1 squeezed).
    w1 = jax.random.normal(k2, (H, C), dtype=jnp.float32) * 0.1   # conv1.weight (64, C, 1)
    b1 = jax.random.normal(k3, (H,), dtype=jnp.float32) * 0.1     # conv1.bias
    w2 = jax.random.normal(k4, (C, H), dtype=jnp.float32) * 0.1   # conv2.weight (C, 64, 1)
    b2 = jax.random.normal(k5, (C,), dtype=jnp.float32) * 0.1     # conv2.bias

    out = residual_block(x, w1, b1, w2, b2)
    out = jax.block_until_ready(out)

    ref = _reference(x, w1, b1, w2, b2)
    assert out.shape == (N, C, L)
    # bf16 MXU operands (f32 accumulation) vs. the f32 reference: loosen tolerance.
    assert jnp.allclose(out, ref, atol=5e-2, rtol=5e-2), "mismatch vs reference"
    print("KERNEL_OK")
</pallas_src>

<mosaic_0001>
module attributes {stable_mosaic.version = 11 : i64} {
  func.func @_resblock_kernel(%arg0: i32, %arg1: i32, %arg2: memref<1x32x512xf32, #tpu.memory_space<vmem>>, %arg3: memref<256x128xbf16, #tpu.memory_space<vmem>>, %arg4: memref<256x1xf32, #tpu.memory_space<vmem>>, %arg5: memref<128x256xbf16, #tpu.memory_space<vmem>>, %arg6: memref<128x1xf32, #tpu.memory_space<vmem>>, %arg7: memref<1x32x512xf32, #tpu.memory_space<vmem>>) attributes {dimension_semantics = [#tpu.dimension_semantics<parallel>, #tpu.dimension_semantics<parallel>], iteration_bounds = array<i64: 2, 1>, scalar_prefetch = 0 : i64, scratch_operands = 0 : i64, tpu.core_type = #tpu.core_type<tc>, window_params = [{transform_indices = @transform_0, window_bounds = array<i64: 1, 32, 512>}, {pipeline_mode = #tpu.pipeline_mode<synchronous>, transform_indices = @transform_1, window_bounds = array<i64: 256, 128>}, {pipeline_mode = #tpu.pipeline_mode<synchronous>, transform_indices = @transform_2, window_bounds = array<i64: 256, 1>}, {pipeline_mode = #tpu.pipeline_mode<synchronous>, transform_indices = @transform_3, window_bounds = array<i64: 128, 256>}, {pipeline_mode = #tpu.pipeline_mode<synchronous>, transform_indices = @transform_4, window_bounds = array<i64: 128, 1>}, {transform_indices = @transform_5, window_bounds = array<i64: 1, 32, 512>}]} {
    %c0 = arith.constant 0 : index
    %c0_0 = arith.constant 0 : index
    %c0_1 = arith.constant 0 : index
    %0 = vector.load %arg2[%c0, %c0_0, %c0_1] : memref<1x32x512xf32, #tpu.memory_space<vmem>>, vector<1x32x512xf32>
    %1 = vector.shape_cast %0 : vector<1x32x512xf32> to vector<32x512xf32>
    %2 = vector.extract_strided_slice %1 {offsets = [0, 0], sizes = [32, 128], strides = [1, 1]} : vector<32x512xf32> to vector<32x128xf32>
    %3 = vector.extract_strided_slice %1 {offsets = [0, 128], sizes = [32, 128], strides = [1, 1]} : vector<32x512xf32> to vector<32x128xf32>
    %4 = vector.extract_strided_slice %1 {offsets = [0, 256], sizes = [32, 128], strides = [1, 1]} : vector<32x512xf32> to vector<32x128xf32>
    %5 = vector.extract_strided_slice %1 {offsets = [0, 384], sizes = [32, 128], strides = [1, 1]} : vector<32x512xf32> to vector<32x128xf32>
    %6 = tpu.concatenate %2, %3, %4, %5 in 0 : vector<32x128xf32>, vector<32x128xf32>, vector<32x128xf32>, vector<32x128xf32> -> vector<128x128xf32>
    %c0_2 = arith.constant 0 : index
    %c0_3 = arith.constant 0 : index
    %7 = vector.load %arg3[%c0_2, %c0_3] : memref<256x128xbf16, #tpu.memory_space<vmem>>, vector<256x128xbf16>
    %8 = arith.truncf %6 : vector<128x128xf32> to vector<128x128xbf16>
    %cst = arith.constant dense<0.000000e+00> : vector<256x128xf32>
    %9 = tpu.matmul %7, %8, %cst {dimension_numbers = #tpu.dot_dimension_numbers<[1], [0], [0], [1], [0, 0, 1, 1], [], []>} : vector<256x128xbf16>, vector<128x128xbf16>, vector<256x128xf32> -> vector<256x128xf32>
    %c0_4 = arith.constant 0 : index
    %c0_5 = arith.constant 0 : index
    %10 = vector.load %arg4[%c0_4, %c0_5] : memref<256x1xf32, #tpu.memory_space<vmem>>, vector<256x1xf32>
    %11 = vector.broadcast %10 : vector<256x1xf32> to vector<256x128xf32>
    %12 = arith.addf %9, %11 : vector<256x128xf32>
    %cst_6 = arith.constant 0.000000e+00 : f32
    %13 = vector.broadcast %cst_6 : f32 to vector<256x128xf32>
    %14 = arith.maximumf %12, %13 : vector<256x128xf32>
    %c0_7 = arith.constant 0 : index
    %c0_8 = arith.constant 0 : index
    %15 = vector.load %arg5[%c0_7, %c0_8] : memref<128x256xbf16, #tpu.memory_space<vmem>>, vector<128x256xbf16>
    %16 = arith.truncf %14 : vector<256x128xf32> to vector<256x128xbf16>
    %cst_9 = arith.constant dense<0.000000e+00> : vector<128x128xf32>
    %17 = tpu.matmul %15, %16, %cst_9 {dimension_numbers = #tpu.dot_dimension_numbers<[1], [0], [0], [1], [0, 0, 1, 1], [], []>} : vector<128x256xbf16>, vector<256x128xbf16>, vector<128x128xf32> -> vector<128x128xf32>
    %c0_10 = arith.constant 0 : index
    %c0_11 = arith.constant 0 : index
    %18 = vector.load %arg6[%c0_10, %c0_11] : memref<128x1xf32, #tpu.memory_space<vmem>>, vector<128x1xf32>
    %19 = vector.broadcast %18 : vector<128x1xf32> to vector<128x128xf32>
    %20 = arith.addf %17, %19 : vector<128x128xf32>
    %21 = vector.extract_strided_slice %20 {offsets = [0, 0], sizes = [32, 128], strides = [1, 1]} : vector<128x128xf32> to vector<32x128xf32>
    %22 = vector.extract_strided_slice %20 {offsets = [32, 0], sizes = [32, 128], strides = [1, 1]} : vector<128x128xf32> to vector<32x128xf32>
    %23 = vector.extract_strided_slice %20 {offsets = [64, 0], sizes = [32, 128], strides = [1, 1]} : vector<128x128xf32> to vector<32x128xf32>
    %24 = vector.extract_strided_slice %20 {offsets = [96, 0], sizes = [32, 128], strides = [1, 1]} : vector<128x128xf32> to vector<32x128xf32>
    %25 = tpu.concatenate %21, %22, %23, %24 in 1 : vector<32x128xf32>, vector<32x128xf32>, vector<32x128xf32>, vector<32x128xf32> -> vector<32x512xf32>
    %26 = arith.addf %1, %25 : vector<32x512xf32>
    %c0_12 = arith.constant 0 : index
    %c0_13 = arith.constant 0 : index
    %c0_14 = arith.constant 0 : index
    %27 = vector.load %arg7[%c0_12, %c0_13, %c0_14] : memref<1x32x512xf32, #tpu.memory_space<vmem>>, vector<1x32x512xf32>
    %28 = vector.shape_cast %27 : vector<1x32x512xf32> to vector<32x512xf32>
    %29 = vector.shape_cast %26 : vector<32x512xf32> to vector<1x32x512xf32>
    tpu.vector_store %arg7[%c0_12, %c0_13, %c0_14], %29 {strides = array<i32>} : memref<1x32x512xf32, #tpu.memory_space<vmem>>, vector<1x32x512xf32>,
    return
  }
  func.func @transform_0(%arg0: i32, %arg1: i32) -> (i32, i32, i32) {
    %c0_i32 = arith.constant 0 : i32
    %c0_i32_0 = arith.constant 0 : i32
    return %arg0, %c0_i32, %arg1 : i32, i32, i32
  }
  func.func @transform_1(%arg0: i32, %arg1: i32) -> (i32, i32) {
    %c0_i32 = arith.constant 0 : i32
    %c0_i32_0 = arith.constant 0 : i32
    %c0_i32_1 = arith.constant 0 : i32
    return %c0_i32, %c0_i32_0 : i32, i32
  }
  func.func @transform_2(%arg0: i32, %arg1: i32) -> (i32, i32) {
    %c0_i32 = arith.constant 0 : i32
    %c0_i32_0 = arith.constant 0 : i32
    %c0_i32_1 = arith.constant 0 : i32
    return %c0_i32, %c0_i32_0 : i32, i32
  }
  func.func @transform_3(%arg0: i32, %arg1: i32) -> (i32, i32) {
    %c0_i32 = arith.constant 0 : i32
    %c0_i32_0 = arith.constant 0 : i32
    %c0_i32_1 = arith.constant 0 : i32
    return %c0_i32, %c0_i32_0 : i32, i32
  }
  func.func @transform_4(%arg0: i32, %arg1: i32) -> (i32, i32) {
    %c0_i32 = arith.constant 0 : i32
    %c0_i32_0 = arith.constant 0 : i32
    %c0_i32_1 = arith.constant 0 : i32
    return %c0_i32, %c0_i32_0 : i32, i32
  }
  func.func @transform_5(%arg0: i32, %arg1: i32) -> (i32, i32, i32) {
    %c0_i32 = arith.constant 0 : i32
    %c0_i32_0 = arith.constant 0 : i32
    return %arg0, %c0_i32, %arg1 : i32, i32, i32
  }
}

</mosaic_0001>

<llo_original>
// kernel: tpu_custom_call.1
$region0: #{tpu_custom_call.1}
  #allocation0 [shape = 'u32[]', space=smem, size = 0x4, offset = 0x4, fixed_abs, tag = 'smem constant byte address 0x4 - core index']
  #allocation1 [shape = 'u32[144,128]{1,0:T(1,128)}', space=vmem, size = 0x12000, scoped, tag = 'internal scratch']
  %s0 = inlined_call_operand.vmem [shape: f32[2,32,512], index: 0, kind: input, shape index: {}]
  %s1 = inlined_call_operand.vmem [shape: bf16[256,128], index: 1, kind: input, shape index: {}]
  %s2 = inlined_call_operand.vmem [shape: f32[256,1], index: 2, kind: input, shape index: {}]
  %s3 = inlined_call_operand.hbm [shape: bf16[128,256], index: 3, kind: input, shape index: {}]
  %s4 = inlined_call_operand.vmem [shape: f32[128,1], index: 4, kind: input, shape index: {}]
  %s5 = inlined_call_operand.hbm [shape: f32[2,32,512], index: 5, kind: output, shape index: {}]
  %s6 = sld [smem:[#allocation0]]
  $region57: #{tpu_custom_call.1} parent=0
    _
  %s8 = ssub.s32 1, %s6
  %s9 = scalar_select 0, %s8, %s6
  $region1: #{tpu_custom_call.1} parent=0
    #allocation2 [shape = 'u8[65536]{0}', space=vmem, size = 0x10000, scoped, tag = 'input window, operand 3, single buffered']
    #allocation3 [shape = 's32[2]{0}', space=sflag, size = 0x8, scoped, tag = 'scoped memory for tpu_custom_call.1']
    #allocation4 [shape = 's32[2]{0}', space=sflag, size = 0x8, scoped, tag = 'scoped memory for tpu_custom_call.1']
    #allocation5 [shape = 'u8[131072]{0}', space=vmem, size = 0x20000, scoped, tag = 'output window, operand 0']
    %10 = vsyncpa [#allocation3], 0
    %11 = vsyncpa [#allocation4], 0
    %s12 = scalar_lea.sflag [#allocation4], 1
    %13 = vsyncpa %s12, 0
    loop: start=0, step=1, limit=4
    $region2: #{tpu_custom_call.1} parent=1 // loop_pre_header
      _
    $region3: #{tpu_custom_call.1} parent=1 // loop_header
      %s15 = sphi 0, %s19
      %p16 = scmp.ge.s32.totalorder %s15, 4
      %s22 = sphi 0, %s34
      %s23 = sphi 0, %s30
      %s24 = sphi 0, %s22
      %s25 = sphi 0, %s23
      %s26 = sphi 0, %s24
      %s27 = sphi 0, %s25
      %s39 = sphi 0, %s41
      %s42 = sphi 0, %s39
      %s43 = sphi 0, %s42
      %s59 = sphi 0, %s43
      %s63 = sphi 0, %s63
      %s65 = sphi 0, %s63
      %s66 = sphi 0, %s65
      %s80 = sphi 0, %s66
      %s84 = sphi 0, %s84
      %s86 = sphi 0, %s84
      %s87 = sphi 0, %s86
      %s101 = sphi 0, %s87
      %s105 = sphi 0, %s105
      %s107 = sphi 0, %s105
      %s108 = sphi 0, %s107
      %s122 = sphi 0, %s108
      %s126 = sphi 0, %s126
      %s128 = sphi 0, %s126
      %s129 = sphi 0, %s128
      %s143 = sphi 0, %s129
      %s151 = sphi 0, %s153
      %s154 = sphi 0, %s151
      %s155 = sphi 0, %s154
      %s171 = sphi 0, %s155
    $region4: #{tpu_custom_call.1} parent=1 // loop_header_branch
      %18 = sbr.rel (%p16) target = $region8
    $region5: #{tpu_custom_call.1} parent=1 // loop_body
      %s20 = ssub.s32 %s15, 1
      %s21 = ssub.s32 %s15, 2
      %s28 = sadd.s32 1, %s23
      %p29 = scmp.ge.s32.totalorder %s28, 1
      %s30 = scalar_select %p29, 0, %s28
      %s31 = sadd.s32 1, %s22
      %s32 = scalar_select %p29, %s31, %s22
      %p33 = scmp.ge.s32.totalorder %s32, 2
      %s34 = scalar_select %p33, 0, %s32
      %s35 = ssub.s32 %s22, %s34
      %s36 = ssub.s32 %s23, %s30
      %s37 = sor.u32 %s35, %s36
      %p38 = scmp.eq.s32.totalorder %s37, 0
      %s40 = sadd.s32 %s39, 1
      %s41 = scalar_select %p38, %s39, %s40
      %p44 = pneg %p38
      %p45 = scmp.eq.s32.totalorder %s15, 1
      %p46 = por %p44, %p45
      %p47 = scmp.ne.s32.totalorder %s39, %s42
      %p48 = scmp.eq.s32.totalorder %s15, 0
      %p49 = por %p47, %p48
      %p50 = scmp.ne.s32.totalorder %s39, %s42
      %p51 = scmp.eq.s32.totalorder %s20, 1
      %p52 = por %p50, %p51
      %p53 = scmp.ne.s32.totalorder %s42, %s43
      %p54 = scmp.eq.s32.totalorder %s20, 0
      %p55 = por %p53, %p54
      %p56 = scmp.ne.s32.totalorder %s42, %s43
      %p57 = scmp.eq.s32.totalorder %s21, 1
      %p58 = por %p56, %p57
      %p60 = scmp.ne.s32.totalorder %s43, %s59
      %p61 = scmp.eq.s32.totalorder %s21, 0
      %p62 = por %p60, %p61
      %s64 = sadd.s32 %s63, 1
      %p67 = scmp.eq.s32.totalorder %s15, 1
      %p68 = scmp.ne.s32.totalorder %s63, %s65
      %p69 = scmp.eq.s32.totalorder %s15, 0
      %p70 = por %p68, %p69
      %p71 = scmp.ne.s32.totalorder %s63, %s65
      %p72 = scmp.eq.s32.totalorder %s20, 1
      %p73 = por %p71, %p72
      %p74 = scmp.ne.s32.totalorder %s65, %s66
      %p75 = scmp.eq.s32.totalorder %s20, 0
      %p76 = por %p74, %p75
      %p77 = scmp.ne.s32.totalorder %s65, %s66
      %p78 = scmp.eq.s32.totalorder %s21, 1
      %p79 = por %p77, %p78
      %p81 = scmp.ne.s32.totalorder %s66, %s80
      %p82 = scmp.eq.s32.totalorder %s21, 0
      %p83 = por %p81, %p82
      %s85 = sadd.s32 %s84, 1
      %p88 = scmp.eq.s32.totalorder %s15, 1
      %p89 = scmp.ne.s32.totalorder %s84, %s86
      %p90 = scmp.eq.s32.totalorder %s15, 0
      %p91 = por %p89, %p90
      %p92 = scmp.ne.s32.totalorder %s84, %s86
      %p93 = scmp.eq.s32.totalorder %s20, 1
      %p94 = por %p92, %p93
      %p95 = scmp.ne.s32.totalorder %s86, %s87
      %p96 = scmp.eq.s32.totalorder %s20, 0
      %p97 = por %p95, %p96
      %p98 = scmp.ne.s32.totalorder %s86, %s87
      %p99 = scmp.eq.s32.totalorder %s21, 1
      %p100 = por %p98, %p99
      %p102 = scmp.ne.s32.totalorder %s87, %s101
      %p103 = scmp.eq.s32.totalorder %s21, 0
      %p104 = por %p102, %p103
      %s106 = sadd.s32 %s105, 1
      %p109 = scmp.eq.s32.totalorder %s15, 1
      %p110 = scmp.ne.s32.totalorder %s105, %s107
      %p111 = scmp.eq.s32.totalorder %s15, 0
      %p112 = por %p110, %p111
      %p113 = scmp.ne.s32.totalorder %s105, %s107
      %p114 = scmp.eq.s32.totalorder %s20, 1
      %p115 = por %p113, %p114
      %p116 = scmp.ne.s32.totalorder %s107, %s108
      %p117 = scmp.eq.s32.totalorder %s20, 0
      %p118 = por %p116, %p117
      %p119 = scmp.ne.s32.totalorder %s107, %s108
      %p120 = scmp.eq.s32.totalorder %s21, 1
      %p121 = por %p119, %p120
      %p123 = scmp.ne.s32.totalorder %s108, %s122
      %p124 = scmp.eq.s32.totalorder %s21, 0
      %p125 = por %p123, %p124
      %s127 = sadd.s32 %s126, 1
      %p130 = scmp.eq.s32.totalorder %s15, 1
      %p131 = scmp.ne.s32.totalorder %s126, %s128
      %p132 = scmp.eq.s32.totalorder %s15, 0
      %p133 = por %p131, %p132
      %p134 = scmp.ne.s32.totalorder %s126, %s128
      %p135 = scmp.eq.s32.totalorder %s20, 1
      %p136 = por %p134, %p135
      %p137 = scmp.ne.s32.totalorder %s128, %s129
      %p138 = scmp.eq.s32.totalorder %s20, 0
      %p139 = por %p137, %p138
      %p140 = scmp.ne.s32.totalorder %s128, %s129
      %p141 = scmp.eq.s32.totalorder %s21, 1
      %p142 = por %p140, %p141
      %p144 = scmp.ne.s32.totalorder %s129, %s143
      %p145 = scmp.eq.s32.totalorder %s21, 0
      %p146 = por %p144, %p145
      %s147 = ssub.s32 %s22, %s34
      %s148 = ssub.s32 %s23, %s30
      %s149 = sor.u32 %s147, %s148
      %p150 = scmp.eq.s32.totalorder %s149, 0
      %s152 = sadd.s32 %s151, 1
      %s153 = scalar_select %p150, %s151, %s152
      %p156 = pneg %p150
      %p157 = scmp.eq.s32.totalorder %s15, 1
      %p158 = por %p156, %p157
      %p159 = scmp.ne.s32.totalorder %s151, %s154
      %p160 = scmp.eq.s32.totalorder %s15, 0
      %p161 = por %p159, %p160
      %p162 = scmp.ne.s32.totalorder %s151, %s154
      %p163 = scmp.eq.s32.totalorder %s20, 1
      %p164 = por %p162, %p163
      %p165 = scmp.ne.s32.totalorder %s154, %s155
      %p166 = scmp.eq.s32.totalorder %s20, 0
      %p167 = por %p165, %p166
      %p168 = scmp.ne.s32.totalorder %s154, %s155
      %p169 = scmp.eq.s32.totalorder %s21, 1
      %p170 = por %p168, %p169
      %p172 = scmp.ne.s32.totalorder %s155, %s171
      %p173 = scmp.eq.s32.totalorder %s21, 0
      %p174 = por %p172, %p173
      %p175 = scmp.le.s32.totalorder 1, %s15
      %p176 = scmp.lt.s32.totalorder %s15, 3
      %p177 = pnand %p175, %p176
      %p178 = pneg %p177
      // Predicated region
      $region9: #{tpu_custom_call.1} parent=5 // pred_check
        _
      $region10: #{tpu_custom_call.1} parent=5 // pred_check_branch
        %180 = sbr.rel (%p177) target = $region12
      $region11: #{tpu_custom_call.1} parent=5 // pred_region
        %s181 = ssub.s32 %s15, 1
        // Predicated region
        $region13: #{tpu_custom_call.1} parent=11 // pred_check
          %p182 = pneg %p76
        $region14: #{tpu_custom_call.1} parent=11 // pred_check_branch
          %184 = sbr.rel (%p182) target = $region16
        $region15: #{tpu_custom_call.1} parent=11 // pred_region
          _
        $region16: #{tpu_custom_call.1} parent=11 // pred_fallthru
          _
        // Predicated region
        $region17: #{tpu_custom_call.1} parent=11 // pred_check
          %p185 = pneg %p97
        $region18: #{tpu_custom_call.1} parent=11 // pred_check_branch
          %187 = sbr.rel (%p185) target = $region20
        $region19: #{tpu_custom_call.1} parent=11 // pred_region
          _
        $region20: #{tpu_custom_call.1} parent=11 // pred_fallthru
          _
        // Predicated region
        $region21: #{tpu_custom_call.1} parent=11 // pred_check
          %p188 = pneg %p118
        $region22: #{tpu_custom_call.1} parent=11 // pred_check_branch
          %190 = sbr.rel (%p188) target = $region24
        $region23: #{tpu_custom_call.1} parent=11 // pred_region
          %s192 = ssub.s32 2048, 2048
          %193 = vsyncadd [#allocation3], %s192
          %s194 = sshll.u32 [#allocation2], 4
          %s195 = int_to_ptr.vmem [resolvable:$true] %s194
          %200 = dma.hbm_to_vmem [thread:$0]  %s3, 2048, %s195, [#allocation3], 128, 128, 8
        $region24: #{tpu_custom_call.1} parent=11 // pred_fallthru
          _
        // Predicated region
        $region25: #{tpu_custom_call.1} parent=11 // pred_check
          %p201 = pneg %p139
        $region26: #{tpu_custom_call.1} parent=11 // pred_check_branch
          %203 = sbr.rel (%p201) target = $region28
        $region27: #{tpu_custom_call.1} parent=11 // pred_region
          _
        $region28: #{tpu_custom_call.1} parent=11 // pred_fallthru
          _
      $region12: #{tpu_custom_call.1} parent=5 // pred_fallthru
        _
      %p204 = scmp.lt.s32.totalorder %s15, 2
      // Predicated region
      $region29: #{tpu_custom_call.1} parent=5 // pred_check
        %p205 = pneg %p204
      $region30: #{tpu_custom_call.1} parent=5 // pred_check_branch
        %207 = sbr.rel (%p205) target = $region32
      $region31: #{tpu_custom_call.1} parent=5 // pred_region
        // Predicated region
        $region33: #{tpu_custom_call.1} parent=31 // pred_check
          %p208 = pneg %p49
        $region34: #{tpu_custom_call.1} parent=31 // pred_check_branch
          %210 = sbr.rel (%p208) target = $region36
        $region35: #{tpu_custom_call.1} parent=31 // pred_region
          %s211 = smul.u32 4, %s23
          %p212 = scmp.lt.s32.totalorder %s22, 1
          %s213 = scalar_select %p212, %s22, 1
          %p214 = scmp.lt.s32.totalorder %s211, 3
          %s215 = scalar_select %p214, %s211, 3
          %s216 = smul.addr %s213, 16
          %s217 = sadd.s32 %s215, %s216
          %s218 = smul.addr %s217, 8
          %s219 = scalar_lea.vmem %s0, %s218
          %s220 = smul.u32 4, %s23
        $region36: #{tpu_custom_call.1} parent=31 // pred_fallthru
          _
      $region32: #{tpu_custom_call.1} parent=5 // pred_fallthru
        _
      %p221 = scmp.le.s32.totalorder 1, %s15
      %p222 = scmp.lt.s32.totalorder %s15, 3
      %p223 = pnand %p221, %p222
      %p224 = pneg %p223
      // Predicated region
      $region37: #{tpu_custom_call.1} parent=5 // pred_check
        _
      $region38: #{tpu_custom_call.1} parent=5 // pred_check_branch
        %226 = sbr.rel (%p223) target = $region40
      $region39: #{tpu_custom_call.1} parent=5 // pred_region
        %s227 = ssub.s32 %s15, 1
        // Predicated region
        $region41: #{tpu_custom_call.1} parent=39 // pred_check
          %p228 = pneg %p118
        $region42: #{tpu_custom_call.1} parent=39 // pred_check_branch
          %230 = sbr.rel (%p228) target = $region44
        $region43: #{tpu_custom_call.1} parent=39 // pred_region
          %231 = dma.done [#allocation3], 2048
        $region44: #{tpu_custom_call.1} parent=39 // pred_fallthru
          _
        %s232 = smul.u32 4, %s25
        %p233 = scmp.lt.s32.totalorder %s24, 1
        %s234 = scalar_select %p233, %s24, 1
        %p235 = scmp.lt.s32.totalorder %s232, 3
        %s236 = scalar_select %p235, %s232, 3
        %s237 = smul.addr %s234, 16
        %s238 = sadd.s32 %s236, %s237
        %s239 = smul.addr %s238, 8
        %s240 = scalar_lea.vmem %s0, %s239
        %p241 = pneg %p55
        %p242 = pneg %p52
        %p243 = pneg %p76
        %p244 = pneg %p73
        %p245 = pneg %p97
        %p246 = pneg %p94
        %p247 = pneg %p118
        %p248 = pneg %p115
        %p249 = pneg %p139
        %p250 = pneg %p136
        %p251 = pneg %p167
        %p252 = pneg %p164
        %s253 = sand.u32 %s154, 1
        %s254 = scalar_lea.sflag [#allocation4], %s253
        %s255 = sand.u32 %s154, 1
        %s256 = smul.addr %s255, 128
        %s257 = scalar_lea.vmem [#allocation5], %s256
        %s258 = smul.u32 4, %s25
        %p259 = scmp.lt.s32.totalorder %s24, 1
        %s260 = scalar_select %p259, %s24, 1
        %p261 = scmp.lt.s32.totalorder %s258, 3
        %s262 = scalar_select %p261, %s258, 3
        %s263 = smul.addr %s260, 16
        %s264 = sadd.s32 %s262, %s263
        %s265 = smul.addr %s264, 8
        %s266 = scalar_lea.vmem %s0, %s265
        %s267 = smul.u32 4, %s25
        %s268 = smul.u32 4, %s25
        %v270 = vld [vmem:[%s266] sm:$0xff]
        %v271 = vld [vmem:[%s266 + $0x8] sm:$0xff]
        %v272 = vld [vmem:[%s266 + $0x10] sm:$0xff]
        %v273 = vld [vmem:[%s266 + $0x18] sm:$0xff]
        %v274 = vld [vmem:[%s266 + $0x20] sm:$0xff]
        %v275 = vld [vmem:[%s266 + $0x28] sm:$0xff]
        %v276 = vld [vmem:[%s266 + $0x30] sm:$0xff]
        %v277 = vld [vmem:[%s266 + $0x38] sm:$0xff]
        %v278 = vld [vmem:[%s266 + $0x40] sm:$0xff]
        %v279 = vld [vmem:[%s266 + $0x48] sm:$0xff]
        %v280 = vld [vmem:[%s266 + $0x50] sm:$0xff]
        %v281 = vld [vmem:[%s266 + $0x58] sm:$0xff]
        %v282 = vld [vmem:[%s266 + $0x60] sm:$0xff]
        %v283 = vld [vmem:[%s266 + $0x68] sm:$0xff]
        %v284 = vld [vmem:[%s266 + $0x70] sm:$0xff]
        %v285 = vld [vmem:[%s266 + $0x78] sm:$0xff]
        %v286 = vld [vmem:[%s1] sm:$0xf]
        %v287 = vld [vmem:[%s1 + $0x4] sm:$0xf]
        %v288 = vld [vmem:[%s1 + $0x8] sm:$0xf]
        %v289 = vld [vmem:[%s1 + $0xc] sm:$0xf]
        %v290 = vld [vmem:[%s1 + $0x10] sm:$0xf]
        %v291 = vld [vmem:[%s1 + $0x14] sm:$0xf]
        %v292 = vld [vmem:[%s1 + $0x18] sm:$0xf]
        %v293 = vld [vmem:[%s1 + $0x1c] sm:$0xf]
        %v294 = vld [vmem:[%s1 + $0x20] sm:$0xf]
        %v295 = vld [vmem:[%s1 + $0x24] sm:$0xf]
        %v296 = vld [vmem:[%s1 + $0x28] sm:$0xf]
        %v297 = vld [vmem:[%s1 + $0x2c] sm:$0xf]
        %v298 = vld [vmem:[%s1 + $0x30] sm:$0xf]
        %v299 = vld [vmem:[%s1 + $0x34] sm:$0xf]
        %v300 = vld [vmem:[%s1 + $0x38] sm:$0xf]
        %v301 = vld [vmem:[%s1 + $0x3c] sm:$0xf]
        %v302 = vld [vmem:[%s1 + $0x40] sm:$0xf]
        %v303 = vld [vmem:[%s1 + $0x44] sm:$0xf]
        %v304 = vld [vmem:[%s1 + $0x48] sm:$0xf]
        %v305 = vld [vmem:[%s1 + $0x4c] sm:$0xf]
        %v306 = vld [vmem:[%s1 + $0x50] sm:$0xf]
        %v307 = vld [vmem:[%s1 + $0x54] sm:$0xf]
        %v308 = vld [vmem:[%s1 + $0x58] sm:$0xf]
        %v309 = vld [vmem:[%s1 + $0x5c] sm:$0xf]
        %v310 = vld [vmem:[%s1 + $0x60] sm:$0xf]
        %v311 = vld [vmem:[%s1 + $0x64] sm:$0xf]
        %v312 = vld [vmem:[%s1 + $0x68] sm:$0xf]
        %v313 = vld [vmem:[%s1 + $0x6c] sm:$0xf]
        %v314 = vld [vmem:[%s1 + $0x70] sm:$0xf]
        %v315 = vld [vmem:[%s1 + $0x74] sm:$0xf]
        %v316 = vld [vmem:[%s1 + $0x78] sm:$0xf]
        %v317 = vld [vmem:[%s1 + $0x7c] sm:$0xf]
        %v318 = vpack.c.bf16 %v274, %v270
        %v319 = vpack.c.bf16 %v282, %v278
        %v320 = vpack.c.bf16 %v275, %v271
        %v321 = vpack.c.bf16 %v283, %v279
        %v322 = vpack.c.bf16 %v276, %v272
        %v323 = vpack.c.bf16 %v284, %v280
        %v324 = vpack.c.bf16 %v277, %v273
        %v325 = vpack.c.bf16 %v285, %v281
        %v326 = vld [vmem:[%s2] sm:$0xff]
        %v327 = vld [vmem:[%s2 + $0x8] sm:$0xff]
        %v328 = vld [vmem:[%s2 + $0x10] sm:$0xff]
        %v329 = vld [vmem:[%s2 + $0x18] sm:$0xff]
        %v330 = vld [vmem:[%s2 + $0x20] sm:$0xff]
        %v331 = vld [vmem:[%s2 + $0x28] sm:$0xff]
        %v332 = vld [vmem:[%s2 + $0x30] sm:$0xff]
        %v333 = vld [vmem:[%s2 + $0x38] sm:$0xff]
        %v334 = vld [vmem:[%s2 + $0x40] sm:$0xff]
        %v335 = vld [vmem:[%s2 + $0x48] sm:$0xff]
        %v336 = vld [vmem:[%s2 + $0x50] sm:$0xff]
        %v337 = vld [vmem:[%s2 + $0x58] sm:$0xff]
        %v338 = vld [vmem:[%s2 + $0x60] sm:$0xff]
        %v339 = vld [vmem:[%s2 + $0x68] sm:$0xff]
        %v340 = vld [vmem:[%s2 + $0x70] sm:$0xff]
        %v341 = vld [vmem:[%s2 + $0x78] sm:$0xff]
        %v342 = vld [vmem:[%s2 + $0x80] sm:$0xff]
        %v343 = vld [vmem:[%s2 + $0x88] sm:$0xff]
        %v344 = vld [vmem:[%s2 + $0x90] sm:$0xff]
        %v345 = vld [vmem:[%s2 + $0x98] sm:$0xff]
        %v346 = vld [vmem:[%s2 + $0xa0] sm:$0xff]
        %v347 = vld [vmem:[%s2 + $0xa8] sm:$0xff]
        %v348 = vld [vmem:[%s2 + $0xb0] sm:$0xff]
        %v349 = vld [vmem:[%s2 + $0xb8] sm:$0xff]
        %v350 = vld [vmem:[%s2 + $0xc0] sm:$0xff]
        %v351 = vld [vmem:[%s2 + $0xc8] sm:$0xff]
        %v352 = vld [vmem:[%s2 + $0xd0] sm:$0xff]
        %v353 = vld [vmem:[%s2 + $0xd8] sm:$0xff]
        %v354 = vld [vmem:[%s2 + $0xe0] sm:$0xff]
        %v355 = vld [vmem:[%s2 + $0xe8] sm:$0xff]
        %v356 = vld [vmem:[%s2 + $0xf0] sm:$0xff]
        %v357 = vld [vmem:[%s2 + $0xf8] sm:$0xff]
        %359 = vset.pattern.permute.xlu0 0
        %360 = vperm.xlu0 %359, %v326
        %v361 = vpop.permute.xlu0 %360
        %364 = vset.pattern.permute.xlu0 0
        %365 = vperm.xlu0 %364, %v327
        %v366 = vpop.permute.xlu0 %365
        %369 = vset.pattern.permute.xlu0 0
        %370 = vperm.xlu0 %369, %v328
        %v371 = vpop.permute.xlu0 %370
        %374 = vset.pattern.permute.xlu0 0
        %375 = vperm.xlu0 %374, %v329
        %v376 = vpop.permute.xlu0 %375
        %379 = vset.pattern.permute.xlu0 0
        %380 = vperm.xlu0 %379, %v330
        %v381 = vpop.permute.xlu0 %380
        %384 = vset.pattern.permute.xlu0 0
        %385 = vperm.xlu0 %384, %v331
        %v386 = vpop.permute.xlu0 %385
        %389 = vset.pattern.permute.xlu0 0
        %390 = vperm.xlu0 %389, %v332
        %v391 = vpop.permute.xlu0 %390
        %394 = vset.pattern.permute.xlu0 0
        %395 = vperm.xlu0 %394, %v333
        %v396 = vpop.permute.xlu0 %395
        %399 = vset.pattern.permute.xlu0 0
        %400 = vperm.xlu0 %399, %v334
        %v401 = vpop.permute.xlu0 %400
        %404 = vset.pattern.permute.xlu0 0
        %405 = vperm.xlu0 %404, %v335
        %v406 = vpop.permute.xlu0 %405
        %409 = vset.pattern.permute.xlu0 0
        %410 = vperm.xlu0 %409, %v336
        %v411 = vpop.permute.xlu0 %410
        %414 = vset.pattern.permute.xlu0 0
        %415 = vperm.xlu0 %414, %v337
        %v416 = vpop.permute.xlu0 %415
        %419 = vset.pattern.permute.xlu0 0
        %420 = vperm.xlu0 %419, %v338
        %v421 = vpop.permute.xlu0 %420
        %424 = vset.pattern.permute.xlu0 0
        %425 = vperm.xlu0 %424, %v339
        %v426 = vpop.permute.xlu0 %425
        %429 = vset.pattern.permute.xlu0 0
        %430 = vperm.xlu0 %429, %v340
        %v431 = vpop.permute.xlu0 %430
        %434 = vset.pattern.permute.xlu0 0
        %435 = vperm.xlu0 %434, %v341
        %v436 = vpop.permute.xlu0 %435
        %439 = vset.pattern.permute.xlu0 0
        %440 = vperm.xlu0 %439, %v342
        %v441 = vpop.permute.xlu0 %440
        %444 = vset.pattern.permute.xlu0 0
        %445 = vperm.xlu0 %444, %v343
        %v446 = vpop.permute.xlu0 %445
        %449 = vset.pattern.permute.xlu0 0
        %450 = vperm.xlu0 %449, %v344
        %v451 = vpop.permute.xlu0 %450
        %454 = vset.pattern.permute.xlu0 0
        %455 = vperm.xlu0 %454, %v345
        %v456 = vpop.permute.xlu0 %455
        %459 = vset.pattern.permute.xlu0 0
        %460 = vperm.xlu0 %459, %v346
        %v461 = vpop.permute.xlu0 %460
        %464 = vset.pattern.permute.xlu0 0
        %465 = vperm.xlu0 %464, %v347
        %v466 = vpop.permute.xlu0 %465
        %469 = vset.pattern.permute.xlu0 0
        %470 = vperm.xlu0 %469, %v348
        %v471 = vpop.permute.xlu0 %470
        %474 = vset.pattern.permute.xlu0 0
        %475 = vperm.xlu0 %474, %v349
        %v476 = vpop.permute.xlu0 %475
        %479 = vset.pattern.permute.xlu0 0
        %480 = vperm.xlu0 %479, %v350
        %v481 = vpop.permute.xlu0 %480
        %484 = vset.pattern.permute.xlu0 0
        %485 = vperm.xlu0 %484, %v351
        %v486 = vpop.permute.xlu0 %485
        %489 = vset.pattern.permute.xlu0 0
        %490 = vperm.xlu0 %489, %v352
        %v491 = vpop.permute.xlu0 %490
        %494 = vset.pattern.permute.xlu0 0
        %495 = vperm.xlu0 %494, %v353
        %v496 = vpop.permute.xlu0 %495
        %499 = vset.pattern.permute.xlu0 0
        %500 = vperm.xlu0 %499, %v354
        %v501 = vpop.permute.xlu0 %500
        %504 = vset.pattern.permute.xlu0 0
        %505 = vperm.xlu0 %504, %v355
        %v506 = vpop.permute.xlu0 %505
        %509 = vset.pattern.permute.xlu0 0
        %510 = vperm.xlu0 %509, %v356
        %v511 = vpop.permute.xlu0 %510
        %514 = vset.pattern.permute.xlu0 0
        %515 = vperm.xlu0 %514, %v357
        %v516 = vpop.permute.xlu0 %515
        %v550 = vunpack.c.l.b16 %v286
        %v551 = vunpack.c.l.b16 %v287
        %v552 = vunpack.c.l.b16 %v288
        %v553 = vunpack.c.l.b16 %v289
        %v554 = vunpack.c.l.b16 %v290
        %v555 = vunpack.c.l.b16 %v291
        %v556 = vunpack.c.l.b16 %v292
        %v557 = vunpack.c.l.b16 %v293
        %v558 = vunpack.c.l.b16 %v294
        %v559 = vunpack.c.l.b16 %v295
        %v560 = vunpack.c.l.b16 %v296
        %v561 = vunpack.c.l.b16 %v297
        %v562 = vunpack.c.l.b16 %v298
        %v563 = vunpack.c.l.b16 %v299
        %v564 = vunpack.c.l.b16 %v300
        %v565 = vunpack.c.l.b16 %v301
        %v566 = vunpack.c.l.b16 %v302
        %v567 = vunpack.c.l.b16 %v303
        %v568 = vunpack.c.l.b16 %v304
        %v569 = vunpack.c.l.b16 %v305
        %v570 = vunpack.c.l.b16 %v306
        %v571 = vunpack.c.l.b16 %v307
        %v572 = vunpack.c.l.b16 %v308
        %v573 = vunpack.c.l.b16 %v309
        %v574 = vunpack.c.l.b16 %v310
        %v575 = vunpack.c.l.b16 %v311
        %v576 = vunpack.c.l.b16 %v312
        %v577 = vunpack.c.l.b16 %v313
        %v578 = vunpack.c.l.b16 %v314
        %v579 = vunpack.c.l.b16 %v315
        %v580 = vunpack.c.l.b16 %v316
        %v581 = vunpack.c.l.b16 %v317
        %v582 = vpack.c.b16 %v551, %v550
        %v583 = vpack.c.b16 %v553, %v552
        %v584 = vpack.c.b16 %v555, %v554
        %v585 = vpack.c.b16 %v557, %v556
        %v586 = vpack.c.b16 %v559, %v558
        %v587 = vpack.c.b16 %v561, %v560
        %v588 = vpack.c.b16 %v563, %v562
        %v589 = vpack.c.b16 %v565, %v564
        %v590 = vpack.c.b16 %v567, %v566
        %v591 = vpack.c.b16 %v569, %v568
        %v592 = vpack.c.b16 %v571, %v570
        %v593 = vpack.c.b16 %v573, %v572
        %v594 = vpack.c.b16 %v575, %v574
        %v595 = vpack.c.b16 %v577, %v576
        %v596 = vpack.c.b16 %v579, %v578
        %v597 = vpack.c.b16 %v581, %v580
        %614 = vmatprep.subr.bf16.mxu0 0
        %615 = vmatpush1.bf16.msra.mxu0 %v318
        %616 = vmatprep.subr.bf16.mxu0 0
        %617 = vmatpush1.bf16.msra.mxu0 %v319
        %618 = vmatprep.subr.bf16.mxu0 0
        %619 = vmatpush1.bf16.msra.mxu0 %v320
        %620 = vmatprep.subr.bf16.mxu0 0
        %621 = vmatpush1.bf16.msra.mxu0 %v321
        %622 = vmatprep.subr.bf16.mxu0 0
        %623 = vmatpush1.bf16.msra.mxu0 %v322
        %624 = vmatprep.subr.bf16.mxu0 0
        %625 = vmatpush1.bf16.msra.mxu0 %v323
        %626 = vmatprep.subr.bf16.mxu0 0
        %627 = vmatpush1.bf16.msra.mxu0 %v324
        %628 = vmatprep.subr.bf16.mxu0 0
        %629 = vmatpush1.bf16.msra.mxu0 %v325
        %630 = vmatprep.subr.bf16.mxu0 0
        %631 = vmatpush1.bf16.msra.mxu0 0
        %632 = vmatprep.subr.bf16.mxu0 0
        %633 = vmatpush1.bf16.msra.mxu0 0
        %634 = vmatprep.subr.bf16.mxu0 0
        %635 = vmatpush1.bf16.msra.mxu0 0
        %636 = vmatprep.subr.bf16.mxu0 0
        %637 = vmatpush1.bf16.msra.mxu0 0
        %638 = vmatprep.subr.bf16.mxu0 0
        %639 = vmatpush1.bf16.msra.mxu0 0
        %640 = vmatprep.subr.bf16.mxu0 0
        %641 = vmatpush1.bf16.msra.mxu0 0
        %642 = vmatprep.subr.bf16.mxu0 0
        %643 = vmatpush1.bf16.msra.mxu0 0
        %644 = vmatprep.subr.bf16.mxu0 0
        %645 = vmatpush1.bf16.msra.mxu0 0
        %646 = vmatprep.mubr.bf16.mxu0 0
        %647 = vmatmul.mubr.bf16.gmra.mrb[0].mxu0 %v582
        %v648 = vpop.f32.mrb[0].mxu0
        %v649 = vadd.f32 %v361, %v648
        %v650 = vpop.f32.mrb[0].mxu0
        %v651 = vpop.f32.mrb[0].mxu0
        %v652 = vadd.f32 %v366, %v651
        %v653 = vpop.f32.mrb[0].mxu0
        %654 = vmatprep.mubr.bf16.mxu0 0
        %655 = vmatmul.mubr.bf16.gmra.mrb[0].mxu0 %v583
        %v656 = vpop.f32.mrb[0].mxu0
        %v657 = vadd.f32 %v371, %v656
        %v658 = vpop.f32.mrb[0].mxu0
        %v659 = vpop.f32.mrb[0].mxu0
        %v660 = vadd.f32 %v376, %v659
        %v661 = vpop.f32.mrb[0].mxu0
        %662 = vmatprep.mubr.bf16.mxu0 0
        %663 = vmatmul.mubr.bf16.gmra.mrb[0].mxu0 %v584
        %v664 = vpop.f32.mrb[0].mxu0
        %v665 = vadd.f32 %v381, %v664
        %v666 = vpop.f32.mrb[0].mxu0
        %v667 = vpop.f32.mrb[0].mxu0
        %v668 = vadd.f32 %v386, %v667
        %v669 = vpop.f32.mrb[0].mxu0
        %670 = vmatprep.mubr.bf16.mxu0 0
        %671 = vmatmul.mubr.bf16.gmra.mrb[0].mxu0 %v585
        %v672 = vpop.f32.mrb[0].mxu0
        %v673 = vadd.f32 %v391, %v672
        %v674 = vpop.f32.mrb[0].mxu0
        %v675 = vpop.f32.mrb[0].mxu0
        %v676 = vadd.f32 %v396, %v675
        %v677 = vpop.f32.mrb[0].mxu0
        %678 = vmatprep.mubr.bf16.mxu0 0
        %679 = vmatmul.mubr.bf16.gmra.mrb[0].mxu0 %v586
        %v680 = vpop.f32.mrb[0].mxu0
        %v681 = vadd.f32 %v401, %v680
        %v682 = vpop.f32.mrb[0].mxu0
        %v683 = vpop.f32.mrb[0].mxu0
        %v684 = vadd.f32 %v406, %v683
        %v685 = vpop.f32.mrb[0].mxu0
        %686 = vmatprep.mubr.bf16.mxu0 0
        %687 = vmatmul.mubr.bf16.gmra.mrb[0].mxu0 %v587
        %v688 = vpop.f32.mrb[0].mxu0
        %v689 = vadd.f32 %v411, %v688
        %v690 = vpop.f32.mrb[0].mxu0
        %v691 = vpop.f32.mrb[0].mxu0
        %v692 = vadd.f32 %v416, %v691
        %v693 = vpop.f32.mrb[0].mxu0
        %694 = vmatprep.mubr.bf16.mxu0 0
        %695 = vmatmul.mubr.bf16.gmra.mrb[0].mxu0 %v588
        %v696 = vpop.f32.mrb[0].mxu0
        %v697 = vadd.f32 %v421, %v696
        %v698 = vpop.f32.mrb[0].mxu0
        %v699 = vpop.f32.mrb[0].mxu0
        %v700 = vadd.f32 %v426, %v699
        %v701 = vpop.f32.mrb[0].mxu0
        %702 = vmatprep.mubr.bf16.mxu0 0
        %703 = vmatmul.mubr.bf16.gmra.mrb[0].mxu0 %v589
        %v704 = vpop.f32.mrb[0].mxu0
        %v705 = vadd.f32 %v431, %v704
        %v706 = vpop.f32.mrb[0].mxu0
        %v707 = vpop.f32.mrb[0].mxu0
        %v708 = vadd.f32 %v436, %v707
        %v709 = vpop.f32.mrb[0].mxu0
        %710 = vmatprep.mubr.bf16.mxu0 0
        %711 = vmatmul.mubr.bf16.gmra.mrb[0].mxu0 %v590
        %v712 = vpop.f32.mrb[0].mxu0
        %v713 = vadd.f32 %v441, %v712
        %v714 = vpop.f32.mrb[0].mxu0
        %v715 = vpop.f32.mrb[0].mxu0
        %v716 = vadd.f32 %v446, %v715
        %v717 = vpop.f32.mrb[0].mxu0
        %718 = vmatprep.mubr.bf16.mxu0 0
        %719 = vmatmul.mubr.bf16.gmra.mrb[0].mxu0 %v591
        %v720 = vpop.f32.mrb[0].mxu0
        %v721 = vadd.f32 %v451, %v720
        %v722 = vpop.f32.mrb[0].mxu0
        %v723 = vpop.f32.mrb[0].mxu0
        %v724 = vadd.f32 %v456, %v723
        %v725 = vpop.f32.mrb[0].mxu0
        %726 = vmatprep.mubr.bf16.mxu0 0
        %727 = vmatmul.mubr.bf16.gmra.mrb[0].mxu0 %v592
        %v728 = vpop.f32.mrb[0].mxu0
        %v729 = vadd.f32 %v461, %v728
        %v730 = vpop.f32.mrb[0].mxu0
        %v731 = vpop.f32.mrb[0].mxu0
        %v732 = vadd.f32 %v466, %v731
        %v733 = vpop.f32.mrb[0].mxu0
        %734 = vmatprep.mubr.bf16.mxu0 0
        %735 = vmatmul.mubr.bf16.gmra.mrb[0].mxu0 %v593
        %v736 = vpop.f32.mrb[0].mxu0
        %v737 = vadd.f32 %v471, %v736
        %v738 = vpop.f32.mrb[0].mxu0
        %v739 = vpop.f32.mrb[0].mxu0
        %v740 = vadd.f32 %v476, %v739
        %v741 = vpop.f32.mrb[0].mxu0
        %742 = vmatprep.mubr.bf16.mxu0 0
        %743 = vmatmul.mubr.bf16.gmra.mrb[0].mxu0 %v594
        %v744 = vpop.f32.mrb[0].mxu0
        %v745 = vadd.f32 %v481, %v744
        %v746 = vpop.f32.mrb[0].mxu0
        %v747 = vpop.f32.mrb[0].mxu0
        %v748 = vadd.f32 %v486, %v747
        %v749 = vpop.f32.mrb[0].mxu0
        %750 = vmatprep.mubr.bf16.mxu0 0
        %751 = vmatmul.mubr.bf16.gmra.mrb[0].mxu0 %v595
        %v752 = vpop.f32.mrb[0].mxu0
        %v753 = vadd.f32 %v491, %v752
        %v754 = vpop.f32.mrb[0].mxu0
        %v755 = vpop.f32.mrb[0].mxu0
        %v756 = vadd.f32 %v496, %v755
        %v757 = vpop.f32.mrb[0].mxu0
        %758 = vmatprep.mubr.bf16.mxu0 0
        %759 = vmatmul.mubr.bf16.gmra.mrb[0].mxu0 %v596
        %v760 = vpop.f32.mrb[0].mxu0
        %v761 = vadd.f32 %v501, %v760
        %v762 = vpop.f32.mrb[0].mxu0
        %v763 = vpop.f32.mrb[0].mxu0
        %v764 = vadd.f32 %v506, %v763
        %v765 = vpop.f32.mrb[0].mxu0
        %766 = vmatprep.mubr.bf16.mxu0 0
        %767 = vmatmul.mubr.bf16.gmra.mrb[0].mxu0 %v597
        %v768 = vpop.f32.mrb[0].mxu0
        %v769 = vadd.f32 %v511, %v768
        %v770 = vpop.f32.mrb[0].mxu0
        %v771 = vpop.f32.mrb[0].mxu0
        %v772 = vadd.f32 %v516, %v771
        %v773 = vpop.f32.mrb[0].mxu0
        %774 = vdwg.mxu0
        %v775 = vmax.f32 %v649, 0.0
        %v776 = vmax.f32 %v652, 0.0
        %v777 = vmax.f32 %v657, 0.0
        %v778 = vmax.f32 %v660, 0.0
        %v779 = vmax.f32 %v665, 0.0
        %v780 = vmax.f32 %v668, 0.0
        %v781 = vmax.f32 %v673, 0.0
        %v782 = vmax.f32 %v676, 0.0
        %v783 = vmax.f32 %v681, 0.0
        %v784 = vmax.f32 %v684, 0.0
        %v785 = vmax.f32 %v689, 0.0
        %v786 = vmax.f32 %v692, 0.0
        %v787 = vmax.f32 %v697, 0.0
        %v788 = vmax.f32 %v700, 0.0
        %v789 = vmax.f32 %v705, 0.0
        %v790 = vmax.f32 %v708, 0.0
        %v791 = vmax.f32 %v713, 0.0
        %v792 = vmax.f32 %v716, 0.0
        %v793 = vmax.f32 %v721, 0.0
        %v794 = vmax.f32 %v724, 0.0
        %v795 = vmax.f32 %v729, 0.0
        %v796 = vmax.f32 %v732, 0.0
        %v797 = vmax.f32 %v737, 0.0
        %v798 = vmax.f32 %v740, 0.0
        %v799 = vmax.f32 %v745, 0.0
        %v800 = vmax.f32 %v748, 0.0
        %v801 = vmax.f32 %v753, 0.0
        %v802 = vmax.f32 %v756, 0.0
        %v803 = vmax.f32 %v761, 0.0
        %v804 = vmax.f32 %v764, 0.0
        %v805 = vmax.f32 %v769, 0.0
        %v806 = vmax.f32 %v772, 0.0
        %v807 = vld [vmem:[#allocation2] sm:$0xff]
        %v808 = vld [vmem:[#allocation2 + $0x8] sm:$0xff]
        %v809 = vld [vmem:[#allocation2 + $0x10] sm:$0xff]
        %v810 = vld [vmem:[#allocation2 + $0x18] sm:$0xff]
        %v811 = vld [vmem:[#allocation2 + $0x20] sm:$0xff]
        %v812 = vld [vmem:[#allocation2 + $0x28] sm:$0xff]
        %v813 = vld [vmem:[#allocation2 + $0x30] sm:$0xff]
        %v814 = vld [vmem:[#allocation2 + $0x38] sm:$0xff]
        %v815 = vld [vmem:[#allocation2 + $0x40] sm:$0xff]
        %v816 = vld [vmem:[#allocation2 + $0x48] sm:$0xff]
        %v817 = vld [vmem:[#allocation2 + $0x50] sm:$0xff]
        %v818 = vld [vmem:[#allocation2 + $0x58] sm:$0xff]
        %v819 = vld [vmem:[#allocation2 + $0x60] sm:$0xff]
        %v820 = vld [vmem:[#allocation2 + $0x68] sm:$0xff]
        %v821 = vld [vmem:[#allocation2 + $0x70] sm:$0xff]
        %v822 = vld [vmem:[#allocation2 + $0x78] sm:$0xff]
        %v823 = vpack.c.bf16 %v776, %v775
        %v824 = vpack.c.bf16 %v778, %v777
        %v825 = vpack.c.bf16 %v780, %v779
        %v826 = vpack.c.bf16 %v782, %v781
        %v827 = vpack.c.bf16 %v784, %v783
        %v828 = vpack.c.bf16 %v786, %v785
        %v829 = vpack.c.bf16 %v788, %v787
        %v830 = vpack.c.bf16 %v790, %v789
        %v831 = vpack.c.bf16 %v792, %v791
        %v832 = vpack.c.bf16 %v794, %v793
        %v833 = vpack.c.bf16 %v796, %v795
        %v834 = vpack.c.bf16 %v798, %v797
        %v835 = vpack.c.bf16 %v800, %v799
        %v836 = vpack.c.bf16 %v802, %v801
        %v837 = vpack.c.bf16 %v804, %v803
        %v838 = vpack.c.bf16 %v806, %v805
        %v839 = vld [vmem:[%s4] sm:$0xff]
        %v840 = vld [vmem:[%s4 + $0x8] sm:$0xff]
        %v841 = vld [vmem:[%s4 + $0x10] sm:$0xff]
        %v842 = vld [vmem:[%s4 + $0x18] sm:$0xff]
        %v843 = vld [vmem:[%s4 + $0x20] sm:$0xff]
        %v844 = vld [vmem:[%s4 + $0x28] sm:$0xff]
        %v845 = vld [vmem:[%s4 + $0x30] sm:$0xff]
        %v846 = vld [vmem:[%s4 + $0x38] sm:$0xff]
        %v847 = vld [vmem:[%s4 + $0x40] sm:$0xff]
        %v848 = vld [vmem:[%s4 + $0x48] sm:$0xff]
        %v849 = vld [vmem:[%s4 + $0x50] sm:$0xff]
        %v850 = vld [vmem:[%s4 + $0x58] sm:$0xff]
        %v851 = vld [vmem:[%s4 + $0x60] sm:$0xff]
        %v852 = vld [vmem:[%s4 + $0x68] sm:$0xff]
        %v853 = vld [vmem:[%s4 + $0x70] sm:$0xff]
        %v854 = vld [vmem:[%s4 + $0x78] sm:$0xff]
        %856 = vset.pattern.permute.xlu0 0
        %857 = vperm.xlu0 %856, %v839
        %v858 = vpop.permute.xlu0 %857
        %861 = vset.pattern.permute.xlu0 0
        %862 = vperm.xlu0 %861, %v840
        %v863 = vpop.permute.xlu0 %862
        %866 = vset.pattern.permute.xlu0 0
        %867 = vperm.xlu0 %866, %v841
        %v868 = vpop.permute.xlu0 %867
        %871 = vset.pattern.permute.xlu0 0
        %872 = vperm.xlu0 %871, %v842
        %v873 = vpop.permute.xlu0 %872
        %876 = vset.pattern.permute.xlu0 0
        %877 = vperm.xlu0 %876, %v843
        %v878 = vpop.permute.xlu0 %877
        %881 = vset.pattern.permute.xlu0 0
        %882 = vperm.xlu0 %881, %v844
        %v883 = vpop.permute.xlu0 %882
        %886 = vset.pattern.permute.xlu0 0
        %887 = vperm.xlu0 %886, %v845
        %v888 = vpop.permute.xlu0 %887
        %891 = vset.pattern.permute.xlu0 0
        %892 = vperm.xlu0 %891, %v846
        %v893 = vpop.permute.xlu0 %892
        %896 = vset.pattern.permute.xlu0 0
        %897 = vperm.xlu0 %896, %v847
        %v898 = vpop.permute.xlu0 %897
        %901 = vset.pattern.permute.xlu0 0
        %902 = vperm.xlu0 %901, %v848
        %v903 = vpop.permute.xlu0 %902
        %906 = vset.pattern.permute.xlu0 0
        %907 = vperm.xlu0 %906, %v849
        %v908 = vpop.permute.xlu0 %907
        %911 = vset.pattern.permute.xlu0 0
        %912 = vperm.xlu0 %911, %v850
        %v913 = vpop.permute.xlu0 %912
        %916 = vset.pattern.permute.xlu0 0
        %917 = vperm.xlu0 %916, %v851
        %v918 = vpop.permute.xlu0 %917
        %921 = vset.pattern.permute.xlu0 0
        %922 = vperm.xlu0 %921, %v852
        %v923 = vpop.permute.xlu0 %922
        %926 = vset.pattern.permute.xlu0 0
        %927 = vperm.xlu0 %926, %v853
        %v928 = vpop.permute.xlu0 %927
        %931 = vset.pattern.permute.xlu0 0
        %932 = vperm.xlu0 %931, %v854
        %v933 = vpop.permute.xlu0 %932
        %v951 = vunpack.c.l.b16 %v807
        %v952 = vunpack.c.h.b16 %v807
        %v953 = vunpack.c.l.b16 %v808
        %v954 = vunpack.c.h.b16 %v808
        %v955 = vunpack.c.l.b16 %v809
        %v956 = vunpack.c.h.b16 %v809
        %v957 = vunpack.c.l.b16 %v810
        %v958 = vunpack.c.h.b16 %v810
        %v959 = vunpack.c.l.b16 %v811
        %v960 = vunpack.c.h.b16 %v811
        %v961 = vunpack.c.l.b16 %v812
        %v962 = vunpack.c.h.b16 %v812
        %v963 = vunpack.c.l.b16 %v813
        %v964 = vunpack.c.h.b16 %v813
        %v965 = vunpack.c.l.b16 %v814
        %v966 = vunpack.c.h.b16 %v814
        %v967 = vunpack.c.l.b16 %v815
        %v968 = vunpack.c.h.b16 %v815
        %v969 = vunpack.c.l.b16 %v816
        %v970 = vunpack.c.h.b16 %v816
        %v971 = vunpack.c.l.b16 %v817
        %v972 = vunpack.c.h.b16 %v817
        %v973 = vunpack.c.l.b16 %v818
        %v974 = vunpack.c.h.b16 %v818
        %v975 = vunpack.c.l.b16 %v819
        %v976 = vunpack.c.h.b16 %v819
        %v977 = vunpack.c.l.b16 %v820
        %v978 = vunpack.c.h.b16 %v820
        %v979 = vunpack.c.l.b16 %v821
        %v980 = vunpack.c.h.b16 %v821
        %v981 = vunpack.c.l.b16 %v822
        %v982 = vunpack.c.h.b16 %v822
        %v983 = vpack.c.b16 %v953, %v951
        %v984 = vpack.c.b16 %v954, %v952
        %v985 = vpack.c.b16 %v957, %v955
        %v986 = vpack.c.b16 %v958, %v956
        %v987 = vpack.c.b16 %v961, %v959
        %v988 = vpack.c.b16 %v962, %v960
        %v989 = vpack.c.b16 %v965, %v963
        %v990 = vpack.c.b16 %v966, %v964
        %v991 = vpack.c.b16 %v969, %v967
        %v992 = vpack.c.b16 %v970, %v968
        %v993 = vpack.c.b16 %v973, %v971
        %v994 = vpack.c.b16 %v974, %v972
        %v995 = vpack.c.b16 %v977, %v975
        %v996 = vpack.c.b16 %v978, %v976
        %v997 = vpack.c.b16 %v981, %v979
        %v998 = vpack.c.b16 %v982, %v980
        %1015 = vmatprep.subr.bf16.mxu0 0
        %1016 = vmatpush1.bf16.msra.mxu0 %v823
        %1017 = vmatprep.subr.bf16.mxu0 0
        %1018 = vmatpush1.bf16.msra.mxu0 %v824
        %1019 = vmatprep.subr.bf16.mxu0 0
        %1020 = vmatpush1.bf16.msra.mxu0 %v825
        %1021 = vmatprep.subr.bf16.mxu0 0
        %1022 = vmatpush1.bf16.msra.mxu0 %v826
        %1023 = vmatprep.subr.bf16.mxu0 0
        %1024 = vmatpush1.bf16.msra.mxu0 %v827
        %1025 = vmatprep.subr.bf16.mxu0 0
        %1026 = vmatpush1.bf16.msra.mxu0 %v828
        %1027 = vmatprep.subr.bf16.mxu0 0
        %1028 = vmatpush1.bf16.msra.mxu0 %v829
        %1029 = vmatprep.subr.bf16.mxu0 0
        %1030 = vmatpush1.bf16.msra.mxu0 %v830
        %1031 = vmatprep.subr.bf16.mxu0 0
        %1032 = vmatpush1.bf16.msra.mxu0 %v831
        %1033 = vmatprep.subr.bf16.mxu0 0
        %1034 = vmatpush1.bf16.msra.mxu0 %v832
        %1035 = vmatprep.subr.bf16.mxu0 0
        %1036 = vmatpush1.bf16.msra.mxu0 %v833
        %1037 = vmatprep.subr.bf16.mxu0 0
        %1038 = vmatpush1.bf16.msra.mxu0 %v834
        %1039 = vmatprep.subr.bf16.mxu0 0
        %1040 = vmatpush1.bf16.msra.mxu0 %v835
        %1041 = vmatprep.subr.bf16.mxu0 0
        %1042 = vmatpush1.bf16.msra.mxu0 %v836
        %1043 = vmatprep.subr.bf16.mxu0 0
        %1044 = vmatpush1.bf16.msra.mxu0 %v837
        %1045 = vmatprep.subr.bf16.mxu0 0
        %1046 = vmatpush1.bf16.msra.mxu0 %v838
        %1047 = vmatprep.mubr.bf16.mxu0 %v984
        %1048 = vmatmul.mubr.bf16.gmra.mrb[0].mxu0 %v983
        %v1049 = vpop.f32.mrb[0].mxu0
        %v1050 = vadd.f32 %v858, %v1049
        %v1051 = vpop.f32.mrb[0].mxu0
        %v1052 = vpop.f32.mrb[0].mxu0
        %v1053 = vadd.f32 %v863, %v1052
        %v1054 = vpop.f32.mrb[0].mxu0
        %1055 = vmatprep.mubr.bf16.mxu0 %v986
        %1056 = vmatmul.mubr.bf16.gmra.mrb[0].mxu0 %v985
        %v1057 = vpop.f32.mrb[0].mxu0
        %v1058 = vadd.f32 %v868, %v1057
        %v1059 = vpop.f32.mrb[0].mxu0
        %v1060 = vpop.f32.mrb[0].mxu0
        %v1061 = vadd.f32 %v873, %v1060
        %v1062 = vpop.f32.mrb[0].mxu0
        %1063 = vmatprep.mubr.bf16.mxu0 %v988
        %1064 = vmatmul.mubr.bf16.gmra.mrb[0].mxu0 %v987
        %v1065 = vpop.f32.mrb[0].mxu0
        %v1066 = vadd.f32 %v878, %v1065
        %v1067 = vpop.f32.mrb[0].mxu0
        %v1068 = vpop.f32.mrb[0].mxu0
        %v1069 = vadd.f32 %v883, %v1068
        %v1070 = vpop.f32.mrb[0].mxu0
        %1071 = vmatprep.mubr.bf16.mxu0 %v990
        %1072 = vmatmul.mubr.bf16.gmra.mrb[0].mxu0 %v989
        %v1073 = vpop.f32.mrb[0].mxu0
        %v1074 = vadd.f32 %v888, %v1073
        %v1075 = vpop.f32.mrb[0].mxu0
        %v1076 = vpop.f32.mrb[0].mxu0
        %v1077 = vadd.f32 %v893, %v1076
        %v1078 = vpop.f32.mrb[0].mxu0
        %1079 = vmatprep.mubr.bf16.mxu0 %v992
        %1080 = vmatmul.mubr.bf16.gmra.mrb[0].mxu0 %v991
        %v1081 = vpop.f32.mrb[0].mxu0
        %v1082 = vadd.f32 %v898, %v1081
        %v1083 = vpop.f32.mrb[0].mxu0
        %v1084 = vpop.f32.mrb[0].mxu0
        %v1085 = vadd.f32 %v903, %v1084
        %v1086 = vpop.f32.mrb[0].mxu0
        %1087 = vmatprep.mubr.bf16.mxu0 %v994
        %1088 = vmatmul.mubr.bf16.gmra.mrb[0].mxu0 %v993
        %v1089 = vpop.f32.mrb[0].mxu0
        %v1090 = vadd.f32 %v908, %v1089
        %v1091 = vpop.f32.mrb[0].mxu0
        %v1092 = vpop.f32.mrb[0].mxu0
        %v1093 = vadd.f32 %v913, %v1092
        %v1094 = vpop.f32.mrb[0].mxu0
        %1095 = vmatprep.mubr.bf16.mxu0 %v996
        %1096 = vmatmul.mubr.bf16.gmra.mrb[0].mxu0 %v995
        %v1097 = vpop.f32.mrb[0].mxu0
        %v1098 = vadd.f32 %v918, %v1097
        %v1099 = vpop.f32.mrb[0].mxu0
        %v1100 = vpop.f32.mrb[0].mxu0
        %v1101 = vadd.f32 %v923, %v1100
        %v1102 = vpop.f32.mrb[0].mxu0
        %1103 = vmatprep.mubr.bf16.mxu0 %v998
        %1104 = vmatmul.mubr.bf16.gmra.mrb[0].mxu0 %v997
        %v1105 = vpop.f32.mrb[0].mxu0
        %v1106 = vadd.f32 %v928, %v1105
        %v1107 = vpop.f32.mrb[0].mxu0
        %v1108 = vpop.f32.mrb[0].mxu0
        %v1109 = vadd.f32 %v933, %v1108
        %v1110 = vpop.f32.mrb[0].mxu0
        %1111 = vdwg.mxu0
        %v1112 = vadd.f32 %v270, %v1050
        %v1113 = vadd.f32 %v271, %v1066
        %v1114 = vadd.f32 %v272, %v1082
        %v1115 = vadd.f32 %v273, %v1098
        %v1116 = vadd.f32 %v274, %v1053
        %v1117 = vadd.f32 %v275, %v1069
        %v1118 = vadd.f32 %v276, %v1085
        %v1119 = vadd.f32 %v277, %v1101
        %v1120 = vadd.f32 %v278, %v1058
        %v1121 = vadd.f32 %v279, %v1074
        %v1122 = vadd.f32 %v280, %v1090
        %v1123 = vadd.f32 %v281, %v1106
        %v1124 = vadd.f32 %v282, %v1061
        %v1125 = vadd.f32 %v283, %v1077
        %v1126 = vadd.f32 %v284, %v1093
        %v1127 = vadd.f32 %v285, %v1109
        %1128 = vst [vmem:[%s257] sm:$0xff] %v1112
        %1129 = vst [vmem:[%s257 + $0x8] sm:$0xff] %v1113
        %1130 = vst [vmem:[%s257 + $0x10] sm:$0xff] %v1114
        %1131 = vst [vmem:[%s257 + $0x18] sm:$0xff] %v1115
        %1132 = vst [vmem:[%s257 + $0x20] sm:$0xff] %v1116
        %1133 = vst [vmem:[%s257 + $0x28] sm:$0xff] %v1117
        %1134 = vst [vmem:[%s257 + $0x30] sm:$0xff] %v1118
        %1135 = vst [vmem:[%s257 + $0x38] sm:$0xff] %v1119
        %1136 = vst [vmem:[%s257 + $0x40] sm:$0xff] %v1120
        %1137 = vst [vmem:[%s257 + $0x48] sm:$0xff] %v1121
        %1138 = vst [vmem:[%s257 + $0x50] sm:$0xff] %v1122
        %1139 = vst [vmem:[%s257 + $0x58] sm:$0xff] %v1123
        %1140 = vst [vmem:[%s257 + $0x60] sm:$0xff] %v1124
        %1141 = vst [vmem:[%s257 + $0x68] sm:$0xff] %v1125
        %1142 = vst [vmem:[%s257 + $0x70] sm:$0xff] %v1126
        %1143 = vst [vmem:[%s257 + $0x78] sm:$0xff] %v1127
        %s1144 = sand.u32 %s154, 1
        %s1145 = scalar_lea.sflag [#allocation4], %s1144
        %s1146 = sand.u32 %s154, 1
        %s1147 = smul.addr %s1146, 128
        %s1148 = scalar_lea.vmem [#allocation5], %s1147
        // Predicated region
        $region45: #{tpu_custom_call.1} parent=39 // pred_check
          %p1149 = pneg %p164
        $region46: #{tpu_custom_call.1} parent=39 // pred_check_branch
          %1151 = sbr.rel (%p1149) target = $region48
        $region47: #{tpu_custom_call.1} parent=39 // pred_region
          %s1152 = smul.u32 4, %s25
          %s1154 = ssub.s32 2048, 2048
          %1155 = vsyncadd %s1145, %s1154
          %s1156 = smul.addr %s24, 16
          %s1157 = sadd.s32 %s1152, %s1156
          %s1158 = smul.addr %s1157, 128
          %s1159 = scalar_lea.hbm %s5, %s1158
          %s1160 = sshll.u32 %s1148, 4
          %s1161 = int_to_ptr.vmem [resolvable:$true] %s1160
          %1166 = dma.vmem_to_hbm [thread:$0]  %s1161, 2048, %s1159, %s1145, 512, 512, 32
        $region48: #{tpu_custom_call.1} parent=39 // pred_fallthru
          _
      $region40: #{tpu_custom_call.1} parent=5 // pred_fallthru
        _
      %p1167 = scmp.le.s32.totalorder 2, %s15
      // Predicated region
      $region49: #{tpu_custom_call.1} parent=5 // pred_check
        %p1168 = pneg %p1167
      $region50: #{tpu_custom_call.1} parent=5 // pred_check_branch
        %1170 = sbr.rel (%p1168) target = $region52
      $region51: #{tpu_custom_call.1} parent=5 // pred_region
        %s1171 = ssub.s32 %s15, 2
        // Predicated region
        $region53: #{tpu_custom_call.1} parent=51 // pred_check
          %p1172 = pneg %p170
        $region54: #{tpu_custom_call.1} parent=51 // pred_check_branch
          %1174 = sbr.rel (%p1172) target = $region56
        $region55: #{tpu_custom_call.1} parent=51 // pred_region
          %s1175 = sand.u32 %s155, 1
          %s1176 = scalar_lea.sflag [#allocation4], %s1175
          %s1177 = sand.u32 %s155, 1
          %s1178 = smul.addr %s1177, 128
          %s1179 = scalar_lea.vmem [#allocation5], %s1178
          %1180 = dma.done %s1176, 2048
        $region56: #{tpu_custom_call.1} parent=51 // pred_fallthru
          _
      $region52: #{tpu_custom_call.1} parent=5 // pred_fallthru
        _
    $region6: #{tpu_custom_call.1} parent=1 // loop_footer
      %s19 = sadd.s32 1, %s15
    $region7: #{tpu_custom_call.1} parent=1 // loop_footer_branch
      %14 = sbr.rel target = $region3
    $region8: #{tpu_custom_call.1} parent=1 // loop_exit
      _
    %1181 = vsyncpa [#allocation3], 1
    %s1182 = scalar_lea.sflag [#allocation3], 1
    %1183 = vsyncpa %s1182, 1
    %1184 = vsyncpa [#allocation4], 1
    %s1185 = scalar_lea.sflag [#allocation4], 1
    %1186 = vsyncpa %s1185, 1

</llo_original>
